<compile_context>
chip_gen: v5e
topology: v5e:2x2
jax: 0.10.0
libtpu: 0.0.40
codegen_flags: <defaults>
</compile_context>

<pallas_src>
import functools
import math

import jax
import jax.numpy as jnp
from jax.experimental import pallas as pl
from jax.experimental.pallas import tpu as pltpu


# ---------------------------------------------------------------------------
# Tiled linear (matmul + bias) kernel — bf16 MXU operands, f32 accumulation
# ---------------------------------------------------------------------------
def _linear_kernel(x_ref, w_ref, b_ref, o_ref, acc_ref):
    k = pl.program_id(2)

    @pl.when(k == 0)
    def _():
        acc_ref[...] = jnp.zeros_like(acc_ref)

    acc_ref[...] += jnp.dot(
        x_ref[...], w_ref[...], preferred_element_type=jnp.float32
    )

    @pl.when(k == pl.num_programs(2) - 1)
    def _():
        o_ref[...] = (acc_ref[...] + b_ref[...]).astype(o_ref.dtype)


def _pick_tile(dim, preferred, align):
    """Largest divisor of `dim` that is a multiple of `align` and <= preferred.

    Falls back to the full dim when the dim is small or has no aligned divisor
    (full-dim blocks are always legal; only the pipelining granularity suffers).
    """
    if dim <= preferred:
        return dim
    t = (preferred // align) * align
    while t >= align:
        if dim % t == 0:
            return t
        t -= align
    return dim


def linear_pallas(x2d, w, b, *, out_dtype=jnp.float32, tm=256, tn=256, tk=512):
    """x2d: (M, K) @ w: (K, N) + b: (N,) -> (M, N), tiled + pipelined."""
    M, K = x2d.shape
    _, N = w.shape
    tm = _pick_tile(M, tm, 8)     # sublane axis of x / out
    tn = _pick_tile(N, tn, 128)   # lane axis of w / out
    tk = _pick_tile(K, tk, 128)   # lane axis of x, sublane axis of w
    b2d = b.reshape(1, N).astype(jnp.float32)
    return pl.pallas_call(
        _linear_kernel,
        out_shape=jax.ShapeDtypeStruct((M, N), out_dtype),
        grid_spec=pltpu.PrefetchScalarGridSpec(
            num_scalar_prefetch=0,
            grid=(M // tm, N // tn, K // tk),
            in_specs=[
                pl.BlockSpec((tm, tk), lambda i, j, k: (i, k)),
                pl.BlockSpec((tk, tn), lambda i, j, k: (k, j)),
                pl.BlockSpec((1, tn), lambda i, j, k: (0, j)),
            ],
            out_specs=pl.BlockSpec((tm, tn), lambda i, j, k: (i, j)),
            scratch_shapes=[pltpu.VMEM((tm, tn), jnp.float32)],
        ),
        compiler_params=pltpu.CompilerParams(
            dimension_semantics=("parallel", "parallel", "arbitrary"),
        ),
    )(x2d, w, b2d)


# ---------------------------------------------------------------------------
# Attention kernel: grid = (batch, head), one (S, 3*d_head) block per step
# ---------------------------------------------------------------------------
def _make_attn_kernel(d_head, mask_mode):
    def kernel(*refs):
        if mask_mode == "none":
            qkv_ref, o_ref = refs
            mask = None
        else:
            qkv_ref, m_ref, o_ref = refs
            mask = m_ref[0] if mask_mode == "per_batch" else m_ref[...]  # (S,S) f32

        qkv = qkv_ref[0, 0]                       # (S, 3*d_head), bf16
        q = qkv[:, 0 * d_head:1 * d_head]         # scale already folded into W_q
        k = qkv[:, 1 * d_head:2 * d_head]
        v = qkv[:, 2 * d_head:3 * d_head]

        # Contract on the last dims (no explicit K transpose); f32 accumulation.
        scores = jax.lax.dot_general(
            q, k, (((1,), (1,)), ((), ())),
            preferred_element_type=jnp.float32)    # (S, S) f32
        if mask is not None:
            scores = scores + mask

        # Softmax in f32 (v5e-safe); fully-masked rows -> zeros (nan_to_num).
        mx = jnp.max(scores, axis=-1, keepdims=True)
        safe_mx = jnp.where(mx > -jnp.inf, mx, 0.0)
        e = jnp.exp(scores - safe_mx)
        l = jnp.sum(e, axis=-1, keepdims=True)
        inv = jnp.where(
            l > 0.0,
            pl.reciprocal(jnp.maximum(l, 1e-30), approx=True),
            0.0)
        p = (e * inv).astype(v.dtype)              # bf16 operand for MXU

        o_ref[0, 0] = jnp.dot(
            p, v, preferred_element_type=jnp.float32).astype(o_ref.dtype)

    return kernel


def attention_pallas(qkv, attn_mask=None):
    """qkv: (B, H, S, 3*d_head) per-head fused projections -> (B, H, S, d_head)."""
    B, H, S, three_dh = qkv.shape
    d_head = three_dh // 3

    if attn_mask is None:
        mask_mode = "none"
        mask_args = ()
        mask_specs = []
    elif attn_mask.ndim == 2:
        mask_mode = "shared"
        mask_args = (attn_mask.astype(jnp.float32),)
        # Same (S,S) block every grid step -> stays resident, no re-DMA.
        mask_specs = [pl.BlockSpec((S, S), lambda b, h: (0, 0))]
    else:  # (B, S, S): one mask per batch, shared across heads (repeat_interleave)
        mask_mode = "per_batch"
        mask_args = (attn_mask.astype(jnp.float32),)
        mask_specs = [pl.BlockSpec((1, S, S), lambda b, h: (b, 0, 0))]

    kernel = _make_attn_kernel(d_head, mask_mode)
    return pl.pallas_call(
        kernel,
        out_shape=jax.ShapeDtypeStruct((B, H, S, d_head), jnp.bfloat16),
        grid=(B, H),
        in_specs=[pl.BlockSpec((1, 1, S, three_dh), lambda b, h: (b, h, 0, 0))]
        + mask_specs,
        out_specs=pl.BlockSpec((1, 1, S, d_head), lambda b, h: (b, h, 0, 0)),
        compiler_params=pltpu.CompilerParams(
            dimension_semantics=("parallel", "parallel"),
        ),
    )(qkv, *mask_args)


# ---------------------------------------------------------------------------
# Parameter prep (done once, outside the forward)
# ---------------------------------------------------------------------------
def prepare_params(params, n_heads):
    """Fuse Q/K/V weights (per-head column groups), fold 1/sqrt(d_head) into Q,
    and cast weights to bf16. Biases stay f32 (added in the f32 accumulator)."""
    E = params["w_q"].shape[0]
    d_head = E // n_heads
    scale = 1.0 / math.sqrt(d_head)
    wq, bq = params["w_q"] * scale, params["b_q"] * scale

    w_cols, b_cols = [], []
    for h in range(n_heads):
        sl = slice(h * d_head, (h + 1) * d_head)
        w_cols += [wq[:, sl], params["w_k"][:, sl], params["w_v"][:, sl]]
        b_cols += [bq[sl], params["b_k"][sl], params["b_v"][sl]]

    return {
        "w_qkv": jnp.concatenate(w_cols, axis=1).astype(jnp.bfloat16),  # (E, 3E)
        "b_qkv": jnp.concatenate(b_cols, axis=0).astype(jnp.float32),   # (3E,)
        "w_out": params["w_out"].astype(jnp.bfloat16),
        "b_out": params["b_out"].astype(jnp.float32),
    }


# ---------------------------------------------------------------------------
# MultiHeadAttention forward
# ---------------------------------------------------------------------------
def multi_head_attention(prep, x, n_heads, attn_mask=None):
    B, S, E = x.shape
    d_head = E // n_heads

    x2d = x.reshape(B * S, E).astype(jnp.bfloat16)

    # Fused QKV projection (bf16 intermediate halves HBM round-trip traffic).
    qkv = linear_pallas(x2d, prep["w_qkv"], prep["b_qkv"],
                        out_dtype=jnp.bfloat16)                # (B*S, 3E)
    # Columns are grouped per head [q_h|k_h|v_h] -> (B, H, S, 3*d_head).
    qkv = qkv.reshape(B, S, n_heads, 3 * d_head).transpose(0, 2, 1, 3)

    o = attention_pallas(qkv, attn_mask)                       # (B, H, S, d_head)
    o = o.transpose(0, 2, 1, 3).reshape(B * S, E)               # head merge

    out = linear_pallas(o, prep["w_out"], prep["b_out"], out_dtype=jnp.float32)
    return out.reshape(B, S, E)


def init_params(key, d_model):
    """Deterministic nn.Linear-style init; weights stored as (in, out)."""
    bound = 1.0 / jnp.sqrt(jnp.float32(d_model))
    params = {}
    for i, name in enumerate(["q", "k", "v", "out"]):
        kw, kb = jax.random.split(jax.random.fold_in(key, i))
        params[f"w_{name}"] = jax.random.uniform(
            kw, (d_model, d_model), jnp.float32, -bound, bound)
        params[f"b_{name}"] = jax.random.uniform(
            kb, (d_model,), jnp.float32, -bound, bound)
    return params


# ---------------------------------------------------------------------------
# Pure-JAX f32 reference for sanity checking
# ---------------------------------------------------------------------------
def reference_mha(params, x, n_heads, attn_mask=None):
    B, S, E = x.shape
    d_head = E // n_heads
    BH = B * n_heads

    x2d = x.reshape(B * S, E)

    def heads(y):
        return (y.reshape(B, S, n_heads, d_head)
                 .transpose(0, 2, 1, 3)
                 .reshape(BH, S, d_head))

    q = heads(x2d @ params["w_q"] + params["b_q"])
    k = heads(x2d @ params["w_k"] + params["b_k"])
    v = heads(x2d @ params["w_v"] + params["b_v"])

    if attn_mask is None:
        mask = jnp.zeros((BH, S, S), jnp.float32)
    elif attn_mask.ndim == 2:
        mask = jnp.broadcast_to(attn_mask[None], (BH, S, S)).astype(jnp.float32)
    else:
        mask = jnp.repeat(attn_mask.astype(jnp.float32), n_heads, axis=0)

    scores = jnp.einsum("bqd,bkd->bqk", q, k) / jnp.sqrt(jnp.float32(d_head))
    p = jax.nn.softmax(scores + mask, axis=-1)
    p = jnp.nan_to_num(p)
    o = jnp.einsum("bqk,bkd->bqd", p, v)
    o = (o.reshape(B, n_heads, S, d_head)
          .transpose(0, 2, 1, 3)
          .reshape(B * S, E))
    o = o @ params["w_out"] + params["b_out"]
    return o.reshape(B, S, E)


if __name__ == "__main__":
    B, S, d_model, n_heads = 2, 8, 32, 4

    key = jax.random.PRNGKey(0)
    kx, kp = jax.random.split(key)
    x = jax.random.normal(kx, (B, S, d_model), jnp.float32)
    params = init_params(kp, d_model)
    prep = prepare_params(params, n_heads)

    fwd = jax.jit(functools.partial(multi_head_attention, n_heads=n_heads))

    # bf16 MXU operands / bf16 intermediates -> looser tolerances vs f32 ref.
    TOL = dict(atol=5e-2, rtol=5e-2)

    # 1) no mask
    out = jax.block_until_ready(fwd(prep, x))
    ref = reference_mha(params, x, n_heads)
    assert out.shape == (B, S, d_model)
    assert jnp.allclose(out, ref, **TOL), "mismatch (no mask)"

    # 2) shared 2D causal mask (resident (S,S) block)
    causal = jnp.where(jnp.tril(jnp.ones((S, S), bool)),
                       0.0, -jnp.inf).astype(jnp.float32)
    out2 = jax.block_until_ready(fwd(prep, x, attn_mask=causal))
    ref2 = reference_mha(params, x, n_heads, attn_mask=causal)
    assert jnp.allclose(out2, ref2, **TOL), "mismatch (2D mask)"

    # 3) per-batch 3D mask, including a fully-masked row (nan_to_num path)
    m3 = jnp.zeros((B, S, S), jnp.float32).at[:, 0, :].set(-jnp.inf)
    out3 = jax.block_until_ready(fwd(prep, x, attn_mask=m3))
    ref3 = reference_mha(params, x, n_heads, attn_mask=m3)
    assert jnp.allclose(out3, ref3, **TOL), "mismatch (3D mask)"

    print("KERNEL_OK")
</pallas_src>

<mosaic_0001>
module attributes {stable_mosaic.version = 11 : i64} {
  func.func @_linear_kernel(%arg0: i32, %arg1: i32, %arg2: i32, %arg3: memref<16x32xbf16, #tpu.memory_space<vmem>>, %arg4: memref<32x96xbf16, #tpu.memory_space<vmem>>, %arg5: memref<1x96xf32, #tpu.memory_space<vmem>>, %arg6: memref<16x96xbf16, #tpu.memory_space<vmem>>, %arg7: memref<16x96xf32, #tpu.memory_space<vmem>>) attributes {dimension_semantics = [#tpu.dimension_semantics<parallel>, #tpu.dimension_semantics<parallel>, #tpu.dimension_semantics<arbitrary>], iteration_bounds = array<i64: 1, 1, 1>, scalar_prefetch = 0 : i64, scratch_operands = 1 : i64, tpu.core_type = #tpu.core_type<tc>, window_params = [{transform_indices = @transform_0, window_bounds = array<i64: 16, 32>}, {transform_indices = @transform_1, window_bounds = array<i64: 32, 96>}, {transform_indices = @transform_2, window_bounds = array<i64: 1, 96>}, {transform_indices = @transform_3, window_bounds = array<i64: 16, 96>}]} {
    %c0_i32 = arith.constant 0 : i32
    %0 = arith.cmpi eq, %arg2, %c0_i32 : i32
    %1 = arith.extui %0 : i1 to i32
    %c0_i32_0 = arith.constant 0 : i32
    %2 = arith.cmpi ne, %1, %c0_i32_0 : i32
    scf.if %2 {
      %cst_10 = arith.constant 0.000000e+00 : f32
      %12 = vector.broadcast %cst_10 : f32 to vector<16x96xf32>
      %c0_11 = arith.constant 0 : index
      %c0_12 = arith.constant 0 : index
      %13 = vector.load %arg7[%c0_11, %c0_12] : memref<16x96xf32, #tpu.memory_space<vmem>>, vector<16x96xf32>
      tpu.vector_store %arg7[%c0_11, %c0_12], %12 {strides = array<i32>} : memref<16x96xf32, #tpu.memory_space<vmem>>, vector<16x96xf32>,
    } else {
    }
    %c0 = arith.constant 0 : index
    %c0_1 = arith.constant 0 : index
    %3 = vector.load %arg7[%c0, %c0_1] : memref<16x96xf32, #tpu.memory_space<vmem>>, vector<16x96xf32>
    %c0_2 = arith.constant 0 : index
    %c0_3 = arith.constant 0 : index
    %4 = vector.load %arg3[%c0_2, %c0_3] : memref<16x32xbf16, #tpu.memory_space<vmem>>, vector<16x32xbf16>
    %c0_4 = arith.constant 0 : index
    %c0_5 = arith.constant 0 : index
    %5 = vector.load %arg4[%c0_4, %c0_5] : memref<32x96xbf16, #tpu.memory_space<vmem>>, vector<32x96xbf16>
    %cst = arith.constant dense<0.000000e+00> : vector<16x96xf32>
    %6 = tpu.matmul %4, %5, %cst {dimension_numbers = #tpu.dot_dimension_numbers<[1], [0], [0], [1], [0, 0, 1, 1], [], []>} : vector<16x32xbf16>, vector<32x96xbf16>, vector<16x96xf32> -> vector<16x96xf32>
    %7 = arith.addf %3, %6 : vector<16x96xf32>
    %c0_6 = arith.constant 0 : index
    %c0_7 = arith.constant 0 : index
    %8 = vector.load %arg7[%c0_6, %c0_7] : memref<16x96xf32, #tpu.memory_space<vmem>>, vector<16x96xf32>
    tpu.vector_store %arg7[%c0_6, %c0_7], %7 {strides = array<i32>} : memref<16x96xf32, #tpu.memory_space<vmem>>, vector<16x96xf32>,
    %c0_i32_8 = arith.constant 0 : i32
    %9 = arith.cmpi eq, %arg2, %c0_i32_8 : i32
    %10 = arith.extui %9 : i1 to i32
    %c0_i32_9 = arith.constant 0 : i32
    %11 = arith.cmpi ne, %10, %c0_i32_9 : i32
    scf.if %11 {
      %c0_10 = arith.constant 0 : index
      %c0_11 = arith.constant 0 : index
      %12 = vector.load %arg7[%c0_10, %c0_11] : memref<16x96xf32, #tpu.memory_space<vmem>>, vector<16x96xf32>
      %c0_12 = arith.constant 0 : index
      %c0_13 = arith.constant 0 : index
      %13 = vector.load %arg5[%c0_12, %c0_13] : memref<1x96xf32, #tpu.memory_space<vmem>>, vector<1x96xf32>
      %14 = vector.broadcast %13 : vector<1x96xf32> to vector<16x96xf32>
      %15 = arith.addf %12, %14 : vector<16x96xf32>
      %16 = arith.truncf %15 : vector<16x96xf32> to vector<16x96xbf16>
      %c0_14 = arith.constant 0 : index
      %c0_15 = arith.constant 0 : index
      %17 = vector.load %arg6[%c0_14, %c0_15] : memref<16x96xbf16, #tpu.memory_space<vmem>>, vector<16x96xbf16>
      tpu.vector_store %arg6[%c0_14, %c0_15], %16 {strides = array<i32>} : memref<16x96xbf16, #tpu.memory_space<vmem>>, vector<16x96xbf16>,
    } else {
    }
    return
  }
  func.func @transform_0(%arg0: i32, %arg1: i32, %arg2: i32) -> (i32, i32) {
    %c0_i32 = arith.constant 0 : i32
    return %arg0, %arg2 : i32, i32
  }
  func.func @transform_1(%arg0: i32, %arg1: i32, %arg2: i32) -> (i32, i32) {
    %c0_i32 = arith.constant 0 : i32
    return %arg2, %arg1 : i32, i32
  }
  func.func @transform_2(%arg0: i32, %arg1: i32, %arg2: i32) -> (i32, i32) {
    %c0_i32 = arith.constant 0 : i32
    %c0_i32_0 = arith.constant 0 : i32
    return %c0_i32, %arg1 : i32, i32
  }
  func.func @transform_3(%arg0: i32, %arg1: i32, %arg2: i32) -> (i32, i32) {
    %c0_i32 = arith.constant 0 : i32
    return %arg0, %arg1 : i32, i32
  }
}

module attributes {stable_mosaic.version = 11 : i64} {
  func.func @kernel(%arg0: i32, %arg1: i32, %arg2: memref<1x1x8x24xbf16, #tpu.memory_space<vmem>>, %arg3: memref<1x1x8x8xbf16, #tpu.memory_space<vmem>>) attributes {dimension_semantics = [#tpu.dimension_semantics<parallel>, #tpu.dimension_semantics<parallel>], iteration_bounds = array<i64: 2, 4>, scalar_prefetch = 0 : i64, scratch_operands = 0 : i64, tpu.core_type = #tpu.core_type<tc>, window_params = [{transform_indices = @transform_0, window_bounds = array<i64: 1, 1, 8, 24>}, {transform_indices = @transform_1, window_bounds = array<i64: 1, 1, 8, 8>}]} {
    %c0 = arith.constant 0 : index
    %c0_0 = arith.constant 0 : index
    %c0_1 = arith.constant 0 : index
    %c0_2 = arith.constant 0 : index
    %0 = vector.load %arg2[%c0, %c0_0, %c0_1, %c0_2] : memref<1x1x8x24xbf16, #tpu.memory_space<vmem>>, vector<1x1x8x24xbf16>
    %1 = vector.shape_cast %0 : vector<1x1x8x24xbf16> to vector<8x24xbf16>
    %2 = vector.extract_strided_slice %1 {offsets = [0, 0], sizes = [8, 8], strides = [1, 1]} : vector<8x24xbf16> to vector<8x8xbf16>
    %3 = vector.extract_strided_slice %1 {offsets = [0, 8], sizes = [8, 8], strides = [1, 1]} : vector<8x24xbf16> to vector<8x8xbf16>
    %4 = vector.extract_strided_slice %1 {offsets = [0, 16], sizes = [8, 8], strides = [1, 1]} : vector<8x24xbf16> to vector<8x8xbf16>
    %cst = arith.constant dense<0.000000e+00> : vector<8x8xf32>
    %5 = tpu.matmul %2, %3, %cst {dimension_numbers = #tpu.dot_dimension_numbers<[1], [1], [0], [0], [0, 0, 1, 0], [], []>} : vector<8x8xbf16>, vector<8x8xbf16>, vector<8x8xf32> -> vector<8x8xf32>
    %cst_3 = arith.constant dense<0xFF800000> : vector<8xf32>
    %6 = vector.multi_reduction <maximumf>, %5, %cst_3 [1] : vector<8x8xf32> to vector<8xf32>
    %7 = vector.shape_cast %6 : vector<8xf32> to vector<8x1xf32>
    %cst_4 = arith.constant 0xFF800000 : f32
    %8 = vector.broadcast %cst_4 : f32 to vector<8x1xf32>
    %9 = arith.cmpf ogt, %7, %8 : vector<8x1xf32>
    %cst_5 = arith.constant 0.000000e+00 : f32
    %10 = vector.broadcast %cst_5 : f32 to vector<8x1xf32>
    %11 = arith.select %9, %7, %10 : vector<8x1xi1>, vector<8x1xf32>
    %12 = vector.broadcast %11 : vector<8x1xf32> to vector<8x8xf32>
    %13 = arith.subf %5, %12 : vector<8x8xf32>
    %14 = math.exp %13 : vector<8x8xf32>
    %cst_6 = arith.constant dense<0.000000e+00> : vector<8xf32>
    %15 = vector.multi_reduction <add>, %14, %cst_6 [1] : vector<8x8xf32> to vector<8xf32>
    %16 = vector.shape_cast %15 : vector<8xf32> to vector<8x1xf32>
    %cst_7 = arith.constant 0.000000e+00 : f32
    %17 = vector.broadcast %cst_7 : f32 to vector<8x1xf32>
    %18 = arith.cmpf ogt, %16, %17 : vector<8x1xf32>
    %cst_8 = arith.constant 1.000000e-30 : f32
    %19 = vector.broadcast %cst_8 : f32 to vector<8x1xf32>
    %20 = arith.maximumf %16, %19 : vector<8x1xf32>
    %21 = tpu.reciprocal %20 {approx = true} : vector<8x1xf32> -> vector<8x1xf32>
    %cst_9 = arith.constant 0.000000e+00 : f32
    %22 = vector.broadcast %cst_9 : f32 to vector<8x1xf32>
    %23 = arith.select %18, %21, %22 : vector<8x1xi1>, vector<8x1xf32>
    %24 = vector.broadcast %23 : vector<8x1xf32> to vector<8x8xf32>
    %25 = arith.mulf %14, %24 : vector<8x8xf32>
    %26 = arith.truncf %25 : vector<8x8xf32> to vector<8x8xbf16>
    %cst_10 = arith.constant dense<0.000000e+00> : vector<8x8xf32>
    %27 = tpu.matmul %26, %4, %cst_10 {dimension_numbers = #tpu.dot_dimension_numbers<[1], [0], [0], [1], [0, 0, 1, 1], [], []>} : vector<8x8xbf16>, vector<8x8xbf16>, vector<8x8xf32> -> vector<8x8xf32>
    %28 = arith.truncf %27 : vector<8x8xf32> to vector<8x8xbf16>
    %c0_11 = arith.constant 0 : index
    %c0_12 = arith.constant 0 : index
    %c0_13 = arith.constant 0 : index
    %c0_14 = arith.constant 0 : index
    %29 = vector.load %arg3[%c0_11, %c0_12, %c0_13, %c0_14] : memref<1x1x8x8xbf16, #tpu.memory_space<vmem>>, vector<1x1x8x8xbf16>
    %30 = vector.shape_cast %29 : vector<1x1x8x8xbf16> to vector<8x8xbf16>
    %31 = vector.shape_cast %28 : vector<8x8xbf16> to vector<1x1x8x8xbf16>
    tpu.vector_store %arg3[%c0_11, %c0_12, %c0_13, %c0_14], %31 {strides = array<i32>} : memref<1x1x8x8xbf16, #tpu.memory_space<vmem>>, vector<1x1x8x8xbf16>,
    return
  }
  func.func @transform_0(%arg0: i32, %arg1: i32) -> (i32, i32, i32, i32) {
    %c0_i32 = arith.constant 0 : i32
    %c0_i32_0 = arith.constant 0 : i32
    %c0_i32_1 = arith.constant 0 : i32
    return %arg0, %arg1, %c0_i32, %c0_i32_0 : i32, i32, i32, i32
  }
  func.func @transform_1(%arg0: i32, %arg1: i32) -> (i32, i32, i32, i32) {
    %c0_i32 = arith.constant 0 : i32
    %c0_i32_0 = arith.constant 0 : i32
    %c0_i32_1 = arith.constant 0 : i32
    return %arg0, %arg1, %c0_i32, %c0_i32_0 : i32, i32, i32, i32
  }
}

module attributes {stable_mosaic.version = 11 : i64} {
  func.func @_linear_kernel(%arg0: i32, %arg1: i32, %arg2: i32, %arg3: memref<16x32xbf16, #tpu.memory_space<vmem>>, %arg4: memref<32x32xbf16, #tpu.memory_space<vmem>>, %arg5: memref<1x32xf32, #tpu.memory_space<vmem>>, %arg6: memref<16x32xf32, #tpu.memory_space<vmem>>, %arg7: memref<16x32xf32, #tpu.memory_space<vmem>>) attributes {dimension_semantics = [#tpu.dimension_semantics<parallel>, #tpu.dimension_semantics<parallel>, #tpu.dimension_semantics<arbitrary>], iteration_bounds = array<i64: 1, 1, 1>, scalar_prefetch = 0 : i64, scratch_operands = 1 : i64, tpu.core_type = #tpu.core_type<tc>, window_params = [{transform_indices = @transform_0, window_bounds = array<i64: 16, 32>}, {transform_indices = @transform_1, window_bounds = array<i64: 32, 32>}, {transform_indices = @transform_2, window_bounds = array<i64: 1, 32>}, {transform_indices = @transform_3, window_bounds = array<i64: 16, 32>}]} {
    %c0_i32 = arith.constant 0 : i32
    %0 = arith.cmpi eq, %arg2, %c0_i32 : i32
    %1 = arith.extui %0 : i1 to i32
    %c0_i32_0 = arith.constant 0 : i32
    %2 = arith.cmpi ne, %1, %c0_i32_0 : i32
    scf.if %2 {
      %cst_10 = arith.constant 0.000000e+00 : f32
      %12 = vector.broadcast %cst_10 : f32 to vector<16x32xf32>
      %c0_11 = arith.constant 0 : index
      %c0_12 = arith.constant 0 : index
      %13 = vector.load %arg7[%c0_11, %c0_12] : memref<16x32xf32, #tpu.memory_space<vmem>>, vector<16x32xf32>
      tpu.vector_store %arg7[%c0_11, %c0_12], %12 {strides = array<i32>} : memref<16x32xf32, #tpu.memory_space<vmem>>, vector<16x32xf32>,
    } else {
    }
    %c0 = arith.constant 0 : index
    %c0_1 = arith.constant 0 : index
    %3 = vector.load %arg7[%c0, %c0_1] : memref<16x32xf32, #tpu.memory_space<vmem>>, vector<16x32xf32>
    %c0_2 = arith.constant 0 : index
    %c0_3 = arith.constant 0 : index
    %4 = vector.load %arg3[%c0_2, %c0_3] : memref<16x32xbf16, #tpu.memory_space<vmem>>, vector<16x32xbf16>
    %c0_4 = arith.constant 0 : index
    %c0_5 = arith.constant 0 : index
    %5 = vector.load %arg4[%c0_4, %c0_5] : memref<32x32xbf16, #tpu.memory_space<vmem>>, vector<32x32xbf16>
    %cst = arith.constant dense<0.000000e+00> : vector<16x32xf32>
    %6 = tpu.matmul %4, %5, %cst {dimension_numbers = #tpu.dot_dimension_numbers<[1], [0], [0], [1], [0, 0, 1, 1], [], []>} : vector<16x32xbf16>, vector<32x32xbf16>, vector<16x32xf32> -> vector<16x32xf32>
    %7 = arith.addf %3, %6 : vector<16x32xf32>
    %c0_6 = arith.constant 0 : index
    %c0_7 = arith.constant 0 : index
    %8 = vector.load %arg7[%c0_6, %c0_7] : memref<16x32xf32, #tpu.memory_space<vmem>>, vector<16x32xf32>
    tpu.vector_store %arg7[%c0_6, %c0_7], %7 {strides = array<i32>} : memref<16x32xf32, #tpu.memory_space<vmem>>, vector<16x32xf32>,
    %c0_i32_8 = arith.constant 0 : i32
    %9 = arith.cmpi eq, %arg2, %c0_i32_8 : i32
    %10 = arith.extui %9 : i1 to i32
    %c0_i32_9 = arith.constant 0 : i32
    %11 = arith.cmpi ne, %10, %c0_i32_9 : i32
    scf.if %11 {
      %c0_10 = arith.constant 0 : index
      %c0_11 = arith.constant 0 : index
      %12 = vector.load %arg7[%c0_10, %c0_11] : memref<16x32xf32, #tpu.memory_space<vmem>>, vector<16x32xf32>
      %c0_12 = arith.constant 0 : index
      %c0_13 = arith.constant 0 : index
      %13 = vector.load %arg5[%c0_12, %c0_13] : memref<1x32xf32, #tpu.memory_space<vmem>>, vector<1x32xf32>
      %14 = vector.broadcast %13 : vector<1x32xf32> to vector<16x32xf32>
      %15 = arith.addf %12, %14 : vector<16x32xf32>
      %c0_14 = arith.constant 0 : index
      %c0_15 = arith.constant 0 : index
      %16 = vector.load %arg6[%c0_14, %c0_15] : memref<16x32xf32, #tpu.memory_space<vmem>>, vector<16x32xf32>
      tpu.vector_store %arg6[%c0_14, %c0_15], %15 {strides = array<i32>} : memref<16x32xf32, #tpu.memory_space<vmem>>, vector<16x32xf32>,
    } else {
    }
    return
  }
  func.func @transform_0(%arg0: i32, %arg1: i32, %arg2: i32) -> (i32, i32) {
    %c0_i32 = arith.constant 0 : i32
    return %arg0, %arg2 : i32, i32
  }
  func.func @transform_1(%arg0: i32, %arg1: i32, %arg2: i32) -> (i32, i32) {
    %c0_i32 = arith.constant 0 : i32
    return %arg2, %arg1 : i32, i32
  }
  func.func @transform_2(%arg0: i32, %arg1: i32, %arg2: i32) -> (i32, i32) {
    %c0_i32 = arith.constant 0 : i32
    %c0_i32_0 = arith.constant 0 : i32
    return %c0_i32, %arg1 : i32, i32
  }
  func.func @transform_3(%arg0: i32, %arg1: i32, %arg2: i32) -> (i32, i32) {
    %c0_i32 = arith.constant 0 : i32
    return %arg0, %arg1 : i32, i32
  }
}

</mosaic_0001>

<llo_original>
// kernel: multi_head_attention.3
$region0: #{multi_head_attention.3}
  #allocation0 [shape = 'u32[]', space=smem, size = 0x4, offset = 0x4, fixed_abs, tag = 'smem constant byte address 0x4 - core index']
  #allocation1 [shape = 'u32[72,128]{1,0:T(1,128)}', space=vmem, size = 0x9000, scoped, tag = 'internal scratch']
  #allocation2 [shape = 'f32[16,96]{1,0:T(8,128)}', space=vmem, size = 0x2000, scoped, tag = 'scratch operand']
  %s0 = inlined_call_operand.vmem [shape: bf16[16,32], index: 0, kind: input, shape index: {}]
  %s1 = inlined_call_operand.vmem [shape: bf16[32,96], index: 1, kind: input, shape index: {}]
  %s2 = inlined_call_operand.vmem [shape: f32[1,96], index: 2, kind: input, shape index: {}]
  %s3 = inlined_call_operand.vmem [shape: bf16[16,96], index: 3, kind: output, shape index: {}]
  %s4 = sld [smem:[#allocation0]]
  $region30: #{multi_head_attention.3} parent=0
    _
  %s6 = ssub.s32 1, %s4
  %s7 = scalar_select 0, %s6, %s4
  // Predicated region
  $region2: #{multi_head_attention.3} parent=0 // pred_check
    _
  $region3: #{multi_head_attention.3} parent=0 // pred_check_branch
    %9 = sbr.rel (0) target = $region5
  $region4: #{multi_head_attention.3} parent=0 // pred_region
    _
  $region5: #{multi_head_attention.3} parent=0 // pred_fallthru
    _
  // Predicated region
  $region6: #{multi_head_attention.3} parent=0 // pred_check
    _
  $region7: #{multi_head_attention.3} parent=0 // pred_check_branch
    %11 = sbr.rel (0) target = $region9
  $region8: #{multi_head_attention.3} parent=0 // pred_region
    _
  $region9: #{multi_head_attention.3} parent=0 // pred_fallthru
    _
  // Predicated region
  $region10: #{multi_head_attention.3} parent=0 // pred_check
    _
  $region11: #{multi_head_attention.3} parent=0 // pred_check_branch
    %13 = sbr.rel (0) target = $region13
  $region12: #{multi_head_attention.3} parent=0 // pred_region
    _
  $region13: #{multi_head_attention.3} parent=0 // pred_fallthru
    _
  %p15 = scmp.eq.s32.totalorder 0, 0
  // Predicated region
  $region14: #{multi_head_attention.3} parent=0 // pred_check
    %p16 = pneg %p15
  $region15: #{multi_head_attention.3} parent=0 // pred_check_branch
    %18 = sbr.rel (%p16) target = $region17
  $region16: #{multi_head_attention.3} parent=0 // pred_region
    %vm19 = vcmask 785408
    %20 = vst.msk [vmem:[#allocation2] sm:$0xff] %vm19, 0.0
    %21 = vst.msk [vmem:[#allocation2 + $0x8] sm:$0xff] %vm19, 0.0
  $region17: #{multi_head_attention.3} parent=0 // pred_fallthru
    _
  %v22 = vld [vmem:[#allocation2] sm:$0xff]
  %v23 = vld [vmem:[#allocation2 + $0x8] sm:$0xff]
  %v24 = vld [vmem:[%s0] sm:$0xf]
  %v25 = vld [vmem:[%s0 + $0x4] sm:$0xf]
  %v26 = vld [vmem:[%s1] sm:$0xf]
  %v27 = vld [vmem:[%s1 + $0x4] sm:$0xf]
  %v28 = vld [vmem:[%s1 + $0x8] sm:$0xf]
  %v29 = vld [vmem:[%s1 + $0xc] sm:$0xf]
  %v32 = vunpack.c.l.b16 %v24
  %v33 = vunpack.c.l.b16 %v25
  %v34 = vpack.c.b16 %v33, %v32
  %v39 = vunpack.c.l.b16 %v26
  %v40 = vunpack.c.l.b16 %v27
  %v41 = vunpack.c.l.b16 %v28
  %v42 = vunpack.c.l.b16 %v29
  %v43 = vpack.c.b16 %v40, %v39
  %v44 = vpack.c.b16 %v42, %v41
  %vm47 = vcmask 261120
  %v49 = vsel %vm47, %v34, 0
  %51 = vmatpush.bf16.msra.mxu0 0
  %52 = vmatpush.bf16.msra.mxu0 0
  %53 = vmatpush.bf16.msra.mxu0 0
  %54 = vmatpush.bf16.msra.mxu0 0
  %55 = vmatpush.bf16.msra.mxu0 0
  %56 = vmatpush.bf16.msra.mxu0 0
  %57 = vmatpush.bf16.msra.mxu0 %v44
  %58 = vmatpush.bf16.msra.mxu0 %v43
  %59 = vmatmul.bf16.gmra.mxu0 %v49
  %v60 = vpop.f32.mrf.mxu0
  %v61 = vadd.f32 0.0, %v60
  %v62 = vpop.f32.mrf.mxu0
  %v63 = vadd.f32 0.0, %v62
  %64 = vdwg.mxu0
  %v65 = vadd.f32 %v22, %v61
  %v66 = vadd.f32 %v23, %v63
  %vm67 = vcmask 785408
  %68 = vst.msk [vmem:[#allocation2] sm:$0xff] %vm67, %v65
  %69 = vst.msk [vmem:[#allocation2 + $0x8] sm:$0xff] %vm67, %v66
  // Predicated region
  $region18: #{multi_head_attention.3} parent=0 // pred_check
    %p70 = pneg %p15
  $region19: #{multi_head_attention.3} parent=0 // pred_check_branch
    %72 = sbr.rel (%p70) target = $region21
  $region20: #{multi_head_attention.3} parent=0 // pred_region
    %v73 = vld [vmem:[#allocation2] sm:$0xff]
    %v74 = vld [vmem:[#allocation2 + $0x8] sm:$0xff]
    %v75 = vld [vmem:[%s2] sm:$0x1]
    %v77 = vperm.slane %v75, 0
    %v79 = vadd.f32 %v73, %v77
    %v80 = vadd.f32 %v74, %v77
    %v81 = vpack.c.bf16 %v79, %v79
    %v82 = vpack.c.bf16 %v80, %v80
    %vm83 = vcmask 781312
    %84 = vst.msk [vmem:[%s3] sm:$0xf] %vm83, %v81
    %85 = vst.msk [vmem:[%s3 + $0x4] sm:$0xf] %vm83, %v82
  $region21: #{multi_head_attention.3} parent=0 // pred_fallthru
    _
  // Predicated region
  $region22: #{multi_head_attention.3} parent=0 // pred_check
    _
  $region23: #{multi_head_attention.3} parent=0 // pred_check_branch
    %87 = sbr.rel (0) target = $region25
  $region24: #{multi_head_attention.3} parent=0 // pred_region
    _
  $region25: #{multi_head_attention.3} parent=0 // pred_fallthru
    _
  // Predicated region
  $region26: #{multi_head_attention.3} parent=0 // pred_check
    _
  $region27: #{multi_head_attention.3} parent=0 // pred_check_branch
    %89 = sbr.rel (0) target = $region29
  $region28: #{multi_head_attention.3} parent=0 // pred_region
    _
  $region29: #{multi_head_attention.3} parent=0 // pred_fallthru
    _

// kernel: multi_head_attention.4
$region0: #{multi_head_attention.4}
  #allocation0 [shape = 'u32[]', space=smem, size = 0x4, offset = 0x4, fixed_abs, tag = 'smem constant byte address 0x4 - core index']
  #allocation1 [shape = 'u32[72,128]{1,0:T(1,128)}', space=vmem, size = 0x9000, scoped, tag = 'internal scratch']
  %s0 = inlined_call_operand.vmem [shape: bf16[2,4,8,24], index: 0, kind: input, shape index: {}]
  %s1 = inlined_call_operand.vmem [shape: bf16[2,4,8,8], index: 1, kind: output, shape index: {}]
  %s2 = sld [smem:[#allocation0]]
  $region37: #{multi_head_attention.4} parent=0
    _
  %s4 = ssub.s32 1, %s2
  %s5 = scalar_select 0, %s4, %s2
  loop: start=0, step=1, limit=10
  $region2: #{multi_head_attention.4} parent=0 // loop_pre_header
    _
  $region3: #{multi_head_attention.4} parent=0 // loop_header
    %s7 = sphi 0, %s11
    %p8 = scmp.ge.s32.totalorder %s7, 10
    %s14 = sphi 0, %s26
    %s15 = sphi 0, %s22
    %s16 = sphi 0, %s14
    %s17 = sphi 0, %s15
    %s18 = sphi 0, %s16
    %s19 = sphi 0, %s17
    %s31 = sphi 0, %s33
    %s34 = sphi 0, %s31
    %s35 = sphi 0, %s34
    %s51 = sphi 0, %s35
    %s59 = sphi 0, %s61
    %s62 = sphi 0, %s59
    %s63 = sphi 0, %s62
    %s79 = sphi 0, %s63
  $region4: #{multi_head_attention.4} parent=0 // loop_header_branch
    %10 = sbr.rel (%p8) target = $region8
  $region5: #{multi_head_attention.4} parent=0 // loop_body
    %s12 = ssub.s32 %s7, 1
    %s13 = ssub.s32 %s7, 2
    %s20 = sadd.s32 1, %s15
    %p21 = scmp.ge.s32.totalorder %s20, 4
    %s22 = scalar_select %p21, 0, %s20
    %s23 = sadd.s32 1, %s14
    %s24 = scalar_select %p21, %s23, %s14
    %p25 = scmp.ge.s32.totalorder %s24, 2
    %s26 = scalar_select %p25, 0, %s24
    %s27 = ssub.s32 %s14, %s26
    %s28 = ssub.s32 %s15, %s22
    %s29 = sor.u32 %s27, %s28
    %p30 = scmp.eq.s32.totalorder %s29, 0
    %s32 = sadd.s32 %s31, 1
    %s33 = scalar_select %p30, %s31, %s32
    %p36 = pneg %p30
    %p37 = scmp.eq.s32.totalorder %s7, 7
    %p38 = por %p36, %p37
    %p39 = scmp.ne.s32.totalorder %s31, %s34
    %p40 = scmp.eq.s32.totalorder %s7, 0
    %p41 = por %p39, %p40
    %p42 = scmp.ne.s32.totalorder %s31, %s34
    %p43 = scmp.eq.s32.totalorder %s12, 7
    %p44 = por %p42, %p43
    %p45 = scmp.ne.s32.totalorder %s34, %s35
    %p46 = scmp.eq.s32.totalorder %s12, 0
    %p47 = por %p45, %p46
    %p48 = scmp.ne.s32.totalorder %s34, %s35
    %p49 = scmp.eq.s32.totalorder %s13, 7
    %p50 = por %p48, %p49
    %p52 = scmp.ne.s32.totalorder %s35, %s51
    %p53 = scmp.eq.s32.totalorder %s13, 0
    %p54 = por %p52, %p53
    %s55 = ssub.s32 %s14, %s26
    %s56 = ssub.s32 %s15, %s22
    %s57 = sor.u32 %s55, %s56
    %p58 = scmp.eq.s32.totalorder %s57, 0
    %s60 = sadd.s32 %s59, 1
    %s61 = scalar_select %p58, %s59, %s60
    %p64 = pneg %p58
    %p65 = scmp.eq.s32.totalorder %s7, 7
    %p66 = por %p64, %p65
    %p67 = scmp.ne.s32.totalorder %s59, %s62
    %p68 = scmp.eq.s32.totalorder %s7, 0
    %p69 = por %p67, %p68
    %p70 = scmp.ne.s32.totalorder %s59, %s62
    %p71 = scmp.eq.s32.totalorder %s12, 7
    %p72 = por %p70, %p71
    %p73 = scmp.ne.s32.totalorder %s62, %s63
    %p74 = scmp.eq.s32.totalorder %s12, 0
    %p75 = por %p73, %p74
    %p76 = scmp.ne.s32.totalorder %s62, %s63
    %p77 = scmp.eq.s32.totalorder %s13, 7
    %p78 = por %p76, %p77
    %p80 = scmp.ne.s32.totalorder %s63, %s79
    %p81 = scmp.eq.s32.totalorder %s13, 0
    %p82 = por %p80, %p81
    %p83 = scmp.le.s32.totalorder 1, %s7
    %p84 = scmp.lt.s32.totalorder %s7, 9
    %p85 = pnand %p83, %p84
    %p86 = pneg %p85
    // Predicated region
    $region9: #{multi_head_attention.4} parent=5 // pred_check
      _
    $region10: #{multi_head_attention.4} parent=5 // pred_check_branch
      %88 = sbr.rel (%p85) target = $region12
    $region11: #{multi_head_attention.4} parent=5 // pred_region
      %s89 = ssub.s32 %s7, 1
    $region12: #{multi_head_attention.4} parent=5 // pred_fallthru
      _
    %p90 = scmp.lt.s32.totalorder %s7, 8
    // Predicated region
    $region13: #{multi_head_attention.4} parent=5 // pred_check
      %p91 = pneg %p90
    $region14: #{multi_head_attention.4} parent=5 // pred_check_branch
      %93 = sbr.rel (%p91) target = $region16
    $region15: #{multi_head_attention.4} parent=5 // pred_region
      // Predicated region
      $region17: #{multi_head_attention.4} parent=15 // pred_check
        %p94 = pneg %p41
      $region18: #{multi_head_attention.4} parent=15 // pred_check_branch
        %96 = sbr.rel (%p94) target = $region20
      $region19: #{multi_head_attention.4} parent=15 // pred_region
        %p97 = scmp.lt.s32.totalorder %s14, 1
        %s98 = scalar_select %p97, %s14, 1
        %p99 = scmp.lt.s32.totalorder %s15, 3
        %s100 = scalar_select %p99, %s15, 3
        %s101 = smul.addr %s98, 4
        %s102 = sadd.s32 %s100, %s101
        %s103 = smul.addr %s102, 4
        %s104 = scalar_lea.vmem %s0, %s103
      $region20: #{multi_head_attention.4} parent=15 // pred_fallthru
        _
    $region16: #{multi_head_attention.4} parent=5 // pred_fallthru
      _
    %p105 = scmp.le.s32.totalorder 1, %s7
    %p106 = scmp.lt.s32.totalorder %s7, 9
    %p107 = pnand %p105, %p106
    %p108 = pneg %p107
    // Predicated region
    $region21: #{multi_head_attention.4} parent=5 // pred_check
      _
    $region22: #{multi_head_attention.4} parent=5 // pred_check_branch
      %110 = sbr.rel (%p107) target = $region24
    $region23: #{multi_head_attention.4} parent=5 // pred_region
      %s111 = ssub.s32 %s7, 1
      %p112 = scmp.lt.s32.totalorder %s16, 1
      %s113 = scalar_select %p112, %s16, 1
      %p114 = scmp.lt.s32.totalorder %s17, 3
      %s115 = scalar_select %p114, %s17, 3
      %s116 = smul.addr %s113, 4
      %s117 = sadd.s32 %s115, %s116
      %s118 = smul.addr %s117, 4
      %s119 = scalar_lea.vmem %s0, %s118
      %p120 = pneg %p47
      %p121 = pneg %p44
      %p122 = pneg %p75
      %p123 = pneg %p72
      %p124 = scmp.lt.s32.totalorder %s16, 1
      %s125 = scalar_select %p124, %s16, 1
      %p126 = scmp.lt.s32.totalorder %s17, 3
      %s127 = scalar_select %p126, %s17, 3
      %s128 = smul.addr %s125, 4
      %s129 = sadd.s32 %s127, %s128
      %s130 = smul.addr %s129, 4
      %s131 = scalar_lea.vmem %s1, %s130
      %p132 = scmp.lt.s32.totalorder %s16, 1
      %s133 = scalar_select %p132, %s16, 1
      %p134 = scmp.lt.s32.totalorder %s17, 3
      %s135 = scalar_select %p134, %s17, 3
      %s136 = smul.addr %s133, 4
      %s137 = sadd.s32 %s135, %s136
      %s138 = smul.addr %s137, 4
      %s139 = scalar_lea.vmem %s0, %s138
      %p140 = scmp.lt.s32.totalorder %s16, 1
      %s141 = scalar_select %p140, %s16, 1
      %p142 = scmp.lt.s32.totalorder %s17, 3
      %s143 = scalar_select %p142, %s17, 3
      %s144 = smul.addr %s141, 4
      %s145 = sadd.s32 %s143, %s144
      %s146 = smul.addr %s145, 4
      %s147 = scalar_lea.vmem %s1, %s146
      %v149 = vld [vmem:[%s139] sm:$0xf]
      %v151 = vunpack.c.l.b16 %v149
      %v152 = vpack.c.b16 %v151, %v151
      %153 = vrot.lane.b32.xlu0 %v152, 120
      %v154 = vpop.permute.xlu0 %153
      %vm155 = vcmask 64512
      %v157 = vsel %vm155, %v149, 0
      %v160 = vsel %vm155, %v154, 0
      %162 = vmatpush.bf16.xpose.msra.mxu0 0
      %163 = vmatpush.bf16.xpose.msra.mxu0 0
      %164 = vmatpush.bf16.xpose.msra.mxu0 0
      %165 = vmatpush.bf16.xpose.msra.mxu0 0
      %166 = vmatpush.bf16.xpose.msra.mxu0 0
      %167 = vmatpush.bf16.xpose.msra.mxu0 0
      %168 = vmatpush.bf16.xpose.msra.mxu0 0
      %169 = vmatpush.bf16.xpose.msra.mxu0 %v160
      %170 = vmatmul.bf16.gmra.mxu0 %v157
      %v171 = vpop.f32.mrf.mxu0
      %v172 = vadd.f32 0.0, %v171
      %v173 = vpop.f32.mrf.mxu0
      %174 = vdwg.mxu0
      %v175 = vsel %vm155, %v172, -inf
      %176 = vmax.xlane.f32.xlu0 %v175
      %v177 = vpop.xlane.xlu0 %176
      %vm178 = vcmp.gt.f32.partialorder %v177, -inf
      %v179 = vsel %vm178, %v177, 0.0
      %v180 = vsub.f32 %v172, %v179
      %v181 = vmul.f32 %v180, 1.442695
      %v182 = vpow.pop %v181
      %v183 = vsel %vm155, %v182, 0.0
      %184 = vadd.xlane.f32.xlu0 %v183
      %v185 = vpop.xlane.xlu0 %184
      %vm186 = vcmp.gt.f32.partialorder %v185, 0.0
      %v187 = vmax.f32 %v185, 1e-30
      %v188 = vrcp.pop %v187
      %v189 = vsel %vm186, %v188, 0.0
      %v190 = vmul.f32 %v182, %v189
      %v191 = vpack.c.bf16 %v190, %v190
      %192 = vrot.lane.b32.xlu0 %v152, 112
      %v193 = vpop.permute.xlu0 %192
      %v195 = vsel %vm155, %v191, 0
      %vm197 = vcmask 1043456
      %v199 = vsel %vm197, %v193, 0
      %201 = vmatpush.bf16.msra.mxu0 0
      %202 = vmatpush.bf16.msra.mxu0 0
      %203 = vmatpush.bf16.msra.mxu0 0
      %204 = vmatpush.bf16.msra.mxu0 0
      %205 = vmatpush.bf16.msra.mxu0 0
      %206 = vmatpush.bf16.msra.mxu0 0
      %207 = vmatpush.bf16.msra.mxu0 0
      %208 = vmatpush.bf16.msra.mxu0 %v199
      %209 = vmatmul.bf16.gmra.mxu0 %v195
      %v210 = vpop.f32.mrf.mxu0
      %v211 = vadd.f32 0.0, %v210
      %v212 = vpop.f32.mrf.mxu0
      %213 = vdwg.mxu0
      %v214 = vpack.c.bf16 %v211, %v211
      %vm215 = vcmask 60416
      %216 = vst.msk [vmem:[%s147] sm:$0xf] %vm215, %v214
      %p217 = scmp.lt.s32.totalorder %s16, 1
      %s218 = scalar_select %p217, %s16, 1
      %p219 = scmp.lt.s32.totalorder %s17, 3
      %s220 = scalar_select %p219, %s17, 3
      %s221 = smul.addr %s218, 4
      %s222 = sadd.s32 %s220, %s221
      %s223 = smul.addr %s222, 4
      %s224 = scalar_lea.vmem %s1, %s223
      // Predicated region
      $region25: #{multi_head_attention.4} parent=23 // pred_check
        %p225 = pneg %p72
      $region26: #{multi_head_attention.4} parent=23 // pred_check_branch
        %227 = sbr.rel (%p225) target = $region28
      $region27: #{multi_head_attention.4} parent=23 // pred_region
        _
      $region28: #{multi_head_attention.4} parent=23 // pred_fallthru
        _
    $region24: #{multi_head_attention.4} parent=5 // pred_fallthru
      _
    %p228 = scmp.le.s32.totalorder 2, %s7
    // Predicated region
    $region29: #{multi_head_attention.4} parent=5 // pred_check
      %p229 = pneg %p228
    $region30: #{multi_head_attention.4} parent=5 // pred_check_branch
      %231 = sbr.rel (%p229) target = $region32
    $region31: #{multi_head_attention.4} parent=5 // pred_region
      %s232 = ssub.s32 %s7, 2
      // Predicated region
      $region33: #{multi_head_attention.4} parent=31 // pred_check
        %p233 = pneg %p78
      $region34: #{multi_head_attention.4} parent=31 // pred_check_branch
        %235 = sbr.rel (%p233) target = $region36
      $region35: #{multi_head_attention.4} parent=31 // pred_region
        %p236 = scmp.lt.s32.totalorder %s18, 1
        %s237 = scalar_select %p236, %s18, 1
        %p238 = scmp.lt.s32.totalorder %s19, 3
        %s239 = scalar_select %p238, %s19, 3
        %s240 = smul.addr %s237, 4
        %s241 = sadd.s32 %s239, %s240
        %s242 = smul.addr %s241, 4
        %s243 = scalar_lea.vmem %s1, %s242
      $region36: #{multi_head_attention.4} parent=31 // pred_fallthru
        _
    $region32: #{multi_head_attention.4} parent=5 // pred_fallthru
      _
  $region6: #{multi_head_attention.4} parent=0 // loop_footer
    %s11 = sadd.s32 1, %s7
  $region7: #{multi_head_attention.4} parent=0 // loop_footer_branch
    %6 = sbr.rel target = $region3
  $region8: #{multi_head_attention.4} parent=0 // loop_exit
    _

// kernel: multi_head_attention.5
$region0: #{multi_head_attention.5}
  #allocation0 [shape = 'u32[]', space=smem, size = 0x4, offset = 0x4, fixed_abs, tag = 'smem constant byte address 0x4 - core index']
  #allocation1 [shape = 'u32[72,128]{1,0:T(1,128)}', space=vmem, size = 0x9000, scoped, tag = 'internal scratch']
  #allocation2 [shape = 'f32[16,32]{1,0:T(8,128)}', space=vmem, size = 0x2000, scoped, tag = 'scratch operand']
  %s0 = inlined_call_operand.vmem [shape: bf16[16,32], index: 0, kind: input, shape index: {}]
  %s1 = inlined_call_operand.vmem [shape: bf16[32,32], index: 1, kind: input, shape index: {}]
  %s2 = inlined_call_operand.vmem [shape: f32[1,32], index: 2, kind: input, shape index: {}]
  %s3 = inlined_call_operand.hbm [shape: f32[16,32], index: 3, kind: output, shape index: {}]
  %s4 = sld [smem:[#allocation0]]
  $region30: #{multi_head_attention.5} parent=0
    _
  %s6 = ssub.s32 1, %s4
  %s7 = scalar_select 0, %s6, %s4
  $region1: #{multi_head_attention.5} parent=0
    #allocation3 [shape = 'u8[8192]{0}', space=vmem, size = 0x2000, scoped, tag = 'output window, operand 0, single buffered']
    #allocation4 [shape = 's32[1]{0}', space=sflag, size = 0x4, scoped, tag = 'scoped memory for multi_head_attention.5']
    %8 = vsyncpa [#allocation4], 0
    // Predicated region
    $region2: #{multi_head_attention.5} parent=1 // pred_check
      _
    $region3: #{multi_head_attention.5} parent=1 // pred_check_branch
      %10 = sbr.rel (0) target = $region5
    $region4: #{multi_head_attention.5} parent=1 // pred_region
      _
    $region5: #{multi_head_attention.5} parent=1 // pred_fallthru
      _
    // Predicated region
    $region6: #{multi_head_attention.5} parent=1 // pred_check
      _
    $region7: #{multi_head_attention.5} parent=1 // pred_check_branch
      %12 = sbr.rel (0) target = $region9
    $region8: #{multi_head_attention.5} parent=1 // pred_region
      _
    $region9: #{multi_head_attention.5} parent=1 // pred_fallthru
      _
    // Predicated region
    $region10: #{multi_head_attention.5} parent=1 // pred_check
      _
    $region11: #{multi_head_attention.5} parent=1 // pred_check_branch
      %14 = sbr.rel (0) target = $region13
    $region12: #{multi_head_attention.5} parent=1 // pred_region
      _
    $region13: #{multi_head_attention.5} parent=1 // pred_fallthru
      _
    %p16 = scmp.eq.s32.totalorder 0, 0
    // Predicated region
    $region14: #{multi_head_attention.5} parent=1 // pred_check
      %p17 = pneg %p16
    $region15: #{multi_head_attention.5} parent=1 // pred_check_branch
      %19 = sbr.rel (%p17) target = $region17
    $region16: #{multi_head_attention.5} parent=1 // pred_region
      %vm20 = vcmask 261120
      %21 = vst.msk [vmem:[#allocation2] sm:$0xff] %vm20, 0.0
      %22 = vst.msk [vmem:[#allocation2 + $0x8] sm:$0xff] %vm20, 0.0
    $region17: #{multi_head_attention.5} parent=1 // pred_fallthru
      _
    %v23 = vld [vmem:[#allocation2] sm:$0xff]
    %v24 = vld [vmem:[#allocation2 + $0x8] sm:$0xff]
    %v25 = vld [vmem:[%s0] sm:$0xf]
    %v26 = vld [vmem:[%s0 + $0x4] sm:$0xf]
    %v27 = vld [vmem:[%s1] sm:$0xf]
    %v28 = vld [vmem:[%s1 + $0x4] sm:$0xf]
    %v29 = vld [vmem:[%s1 + $0x8] sm:$0xf]
    %v30 = vld [vmem:[%s1 + $0xc] sm:$0xf]
    %v33 = vunpack.c.l.b16 %v25
    %v34 = vunpack.c.l.b16 %v26
    %v35 = vpack.c.b16 %v34, %v33
    %v40 = vunpack.c.l.b16 %v27
    %v41 = vunpack.c.l.b16 %v28
    %v42 = vunpack.c.l.b16 %v29
    %v43 = vunpack.c.l.b16 %v30
    %v44 = vpack.c.b16 %v41, %v40
    %v45 = vpack.c.b16 %v43, %v42
    %vm48 = vcmask 261120
    %v50 = vsel %vm48, %v35, 0
    %52 = vmatpush.bf16.msra.mxu0 0
    %53 = vmatpush.bf16.msra.mxu0 0
    %54 = vmatpush.bf16.msra.mxu0 0
    %55 = vmatpush.bf16.msra.mxu0 0
    %56 = vmatpush.bf16.msra.mxu0 0
    %57 = vmatpush.bf16.msra.mxu0 0
    %58 = vmatpush.bf16.msra.mxu0 %v45
    %59 = vmatpush.bf16.msra.mxu0 %v44
    %60 = vmatmul.bf16.gmra.mxu0 %v50
    %v61 = vpop.f32.mrf.mxu0
    %v62 = vadd.f32 0.0, %v61
    %v63 = vpop.f32.mrf.mxu0
    %v64 = vadd.f32 0.0, %v63
    %65 = vdwg.mxu0
    %v66 = vadd.f32 %v23, %v62
    %v67 = vadd.f32 %v24, %v64
    %68 = vst.msk [vmem:[#allocation2] sm:$0xff] %vm48, %v66
    %69 = vst.msk [vmem:[#allocation2 + $0x8] sm:$0xff] %vm48, %v67
    // Predicated region
    $region18: #{multi_head_attention.5} parent=1 // pred_check
      %p70 = pneg %p16
    $region19: #{multi_head_attention.5} parent=1 // pred_check_branch
      %72 = sbr.rel (%p70) target = $region21
    $region20: #{multi_head_attention.5} parent=1 // pred_region
      %v73 = vld [vmem:[#allocation2] sm:$0xff]
      %v74 = vld [vmem:[#allocation2 + $0x8] sm:$0xff]
      %v75 = vld [vmem:[%s2] sm:$0x1]
      %v77 = vperm.slane %v75, 0
      %v79 = vadd.f32 %v73, %v77
      %v80 = vadd.f32 %v74, %v77
      %81 = vst.msk [vmem:[#allocation3] sm:$0xff] %vm48, %v79
      %82 = vst.msk [vmem:[#allocation3 + $0x8] sm:$0xff] %vm48, %v80
    $region21: #{multi_head_attention.5} parent=1 // pred_fallthru
      _
    // Predicated region
    $region22: #{multi_head_attention.5} parent=1 // pred_check
      _
    $region23: #{multi_head_attention.5} parent=1 // pred_check_branch
      %84 = sbr.rel (0) target = $region25
    $region24: #{multi_head_attention.5} parent=1 // pred_region
      %86 = vsyncadd [#allocation4], 0
      %s87 = sshll.u32 [#allocation3], 4
      %s88 = int_to_ptr.vmem [resolvable:$true] %s87
      %s89 = sshll.u32 %s3, 4
      %s90 = int_to_ptr.hbm [resolvable:$true] %s89
      %95 = dma.vmem_to_hbm [thread:$0]  %s88, 256, %s90, [#allocation4], 128, 128, 8
    $region25: #{multi_head_attention.5} parent=1 // pred_fallthru
      _
    // Predicated region
    $region26: #{multi_head_attention.5} parent=1 // pred_check
      _
    $region27: #{multi_head_attention.5} parent=1 // pred_check_branch
      %97 = sbr.rel (0) target = $region29
    $region28: #{multi_head_attention.5} parent=1 // pred_region
      %99 = dma.done [#allocation4], 256
    $region29: #{multi_head_attention.5} parent=1 // pred_fallthru
      _
    %100 = vsyncpa [#allocation4], 1

</llo_original>
